<compile_context>
chip_gen: v7x
topology: tpu7x:2x2x1
jax: 0.10.0
libtpu: 0.0.40
codegen_flags: <defaults>
</compile_context>

<pallas_src>
import jax
import jax.numpy as jnp
from jax import lax
from jax.experimental import pallas as pl
from jax.experimental.pallas import tpu as pltpu


def conv_layer_kernel(x_ref, weff_ref, beff_ref, a_ref, b_ref, g_ref, bt_ref,
                      ml_ref, mr_ref, o_ref):
    x = x_ref[0]                                   # (S, N) f32, N = padded lane width (mult of 128)
    N = x.shape[1]

    # +/-1 shifts along the conv length axis (lanes) via XLU rolls.  The precomputed multiplicative
    # masks realize both the k=3 zero padding and the folded-batch boundaries (wrapped lanes are
    # always masked, so roll wrap never leaks into valid lanes).
    x_m1 = pltpu.roll(x, shift=1, axis=1) * ml_ref[...]        # x[:, t-1]
    x_p1 = pltpu.roll(x, shift=N - 1, axis=1) * mr_ref[...]    # x[:, t+1]

    # conv1 and conv2 folded into ONE MXU matmul: (S, 3S) @ [x_{t-1}; x; x_{t+1}] + folded bias.
    xs = jnp.concatenate([x_m1, x, x_p1], axis=0)                                       # (3S, N)
    h = jnp.dot(weff_ref[...], xs, preferred_element_type=jnp.float32) + beff_ref[...]  # (S, N)

    # residual + ReLU
    r = x + jnp.maximum(h, 0.0)

    # LayerNorm over each H block of the lane axis via the FACTORED block-averaging matrix
    # P = A @ B:  (r @ A) is the per-block sum/H (S, nb); (. @ B) broadcasts it back along lanes.
    mean = jnp.dot(jnp.dot(r, a_ref[...], preferred_element_type=jnp.float32),
                   b_ref[...], preferred_element_type=jnp.float32)
    c = r - mean
    var = jnp.dot(jnp.dot(c * c, a_ref[...], preferred_element_type=jnp.float32),
                  b_ref[...], preferred_element_type=jnp.float32)
    inv = lax.rsqrt(var + 1e-5)                    # eps matches nn.LayerNorm default
    o_ref[0] = c * inv * g_ref[...] + bt_ref[...]


def make_conv_layer(w1, b1, w2, b2, gamma, beta, *, batch, num_blocks=None):
    """One-time prep for the Conv_Layer forward; returns apply(x) for x of shape (B, S, H).

    w1: (2S, S, 3) Conv1d(S->2S, k=3) weight, b1: (2S,)
    w2: (S, 2S)    Conv1d(2S->S, k=1) weight, b2: (S,)
    gamma/beta: (H,) LayerNorm params.
    num_blocks: grid steps the batch is split over.  If None it is auto-sized so each step folds
    ~512 lanes (>=256 fills the 256-wide MXU, and multiple steps enable DMA/compute pipelining);
    tiny batches stay at a single step to avoid per-step overhead and lane-padding waste.
    """
    two_s, S, ktaps = w1.shape
    assert ktaps == 3 and two_s == 2 * S
    H = int(gamma.shape[0])

    if num_blocks is None:
        target_lanes = 512
        bs_target = max(1, target_lanes // H)          # batches to fold per step for ~512 lanes
        cap = max(1, batch // bs_target)
        num_blocks = 1
        for d in range(1, cap + 1):                    # largest divisor of batch <= cap
            if batch % d == 0:
                num_blocks = d
    assert batch % num_blocks == 0
    bs = batch // num_blocks            # batches fused per grid step (folded onto lanes)
    n = bs * H
    n_pad = ((n + 127) // 128) * 128    # lane-dense: pad the folded lane axis to a 128 multiple
    nb = -(-n_pad // H)                 # number of H blocks along the padded lane axis

    # ---------- one-time parameter prep (hoisted out of the per-call path) ----------
    # Tap order matches the in-kernel stacking [x_{t-1}; x; x_{t+1}] (PyTorch taps k=0,1,2).
    w1_cat = jnp.concatenate([w1[:, :, 0], w1[:, :, 1], w1[:, :, 2]], axis=1)   # (2S, 3S)
    w_eff = (w2 @ w1_cat).astype(jnp.float32)                                   # conv2∘conv1 (S, 3S)
    b_eff = (w2 @ b1 + b2).reshape(S, 1).astype(jnp.float32)                    # folded bias

    reps = -(-n_pad // H)
    g_t = jnp.tile(gamma, reps)[:n_pad].reshape(1, n_pad).astype(jnp.float32)
    bt_t = jnp.tile(beta, reps)[:n_pad].reshape(1, n_pad).astype(jnp.float32)

    pos = jnp.arange(n_pad) % H
    m_left = (pos != 0).astype(jnp.float32).reshape(1, n_pad)       # kills x_{t-1} at block starts
    m_right = (pos != H - 1).astype(jnp.float32).reshape(1, n_pad)  # kills x_{t+1} at block ends

    blk = jnp.arange(n_pad) // H        # padding starts on an H-block boundary (n = bs*H)
    a_mat = ((blk[:, None] == jnp.arange(nb)[None, :]).astype(jnp.float32) / H)  # (n_pad, nb)
    b_mat = (jnp.arange(nb)[:, None] == blk[None, :]).astype(jnp.float32)        # (nb, n_pad)

    # Explicit VMEM budget (v7x-safe: clamp to its 64-MiB per-TC ceiling).
    tile_bytes = S * n_pad * 4
    const_bytes = 4 * (S * 3 * S + S + 2 * n_pad * nb + 4 * n_pad)
    est = 4 * tile_bytes + 8 * tile_bytes + const_bytes   # in/out double-buffered + live temps + consts
    vmem_limit = int(min(max(2 * est, 32 << 20), 64 << 20))

    def _build_call(single_buffer_consts):
        def const_spec(shape):
            idx = lambda i, _n=len(shape): (0,) * _n
            if single_buffer_consts:
                # Constant index_map across the grid -> single-buffer to halve resident VMEM.
                return pl.BlockSpec(shape, idx, pipeline_mode=pl.Buffered(1))
            return pl.BlockSpec(shape, idx)

        return pl.pallas_call(
            conv_layer_kernel,
            out_shape=jax.ShapeDtypeStruct((num_blocks, S, n_pad), jnp.float32),
            grid_spec=pltpu.PrefetchScalarGridSpec(
                num_scalar_prefetch=0,
                grid=(num_blocks,),
                in_specs=[
                    pl.BlockSpec((1, S, n_pad), lambda i: (i, 0, 0)),  # x, batch-folded, lane-dense
                    const_spec((S, 3 * S)),                            # W_eff (conv2 folded into conv1)
                    const_spec((S, 1)),                                # b_eff
                    const_spec((n_pad, nb)),                           # A (block-mean factor)
                    const_spec((nb, n_pad)),                           # B (block-broadcast factor)
                    const_spec((1, n_pad)),                            # gamma (tiled)
                    const_spec((1, n_pad)),                            # beta  (tiled)
                    const_spec((1, n_pad)),                            # left tap mask
                    const_spec((1, n_pad)),                            # right tap mask
                ],
                out_specs=pl.BlockSpec((1, S, n_pad), lambda i: (i, 0, 0)),
            ),
            compiler_params=pltpu.CompilerParams(
                dimension_semantics=("parallel",),      # shards across TCs on v7x when num_blocks > 1
                vmem_limit_bytes=vmem_limit,
            ),
        )

    def _make_apply(call):
        @jax.jit
        def apply_jit(x):
            x = x.astype(jnp.float32)
            # Per-call layout plumbing: fold batch onto the lane axis, pad to a 128 multiple.
            xt = x.reshape(num_blocks, bs, S, H).transpose(0, 2, 1, 3).reshape(num_blocks, S, n)
            if n_pad != n:
                xt = jnp.pad(xt, ((0, 0), (0, 0), (0, n_pad - n)))
            out = call(xt, w_eff, b_eff, a_mat, b_mat, g_t, bt_t, m_left, m_right)
            out = out[:, :, :n].reshape(num_blocks, S, bs, H)
            return out.transpose(0, 2, 1, 3).reshape(batch, S, H)
        return apply_jit

    # Prefer single-buffered constants; fall back transparently if this jax version's top-level
    # TPU pallas_call does not accept pipeline_mode on BlockSpec.
    try:
        preferred = _make_apply(_build_call(True))
    except Exception:
        preferred = None
    fallback = _make_apply(_build_call(False))
    state = {"fn": preferred}

    def apply(x):
        B, S_, H_ = x.shape
        assert (B, S_, H_) == (batch, S, H)
        if state["fn"] is not None:
            try:
                return state["fn"](x)
            except Exception:
                state["fn"] = None
        return fallback(x)

    return apply


def conv_layer_ref(x, w1, b1, w2, b2, gamma, beta):
    """Pure-JAX reference matching the PyTorch forward."""
    xp = jnp.pad(x, ((0, 0), (0, 0), (1, 1)))
    h1 = (jnp.einsum('oc,bct->bot', w1[:, :, 0], xp[:, :, :-2])
          + jnp.einsum('oc,bct->bot', w1[:, :, 1], xp[:, :, 1:-1])
          + jnp.einsum('oc,bct->bot', w1[:, :, 2], xp[:, :, 2:])
          + b1[None, :, None])
    h2 = jnp.einsum('oc,bct->bot', w2, h1) + b2[None, :, None]
    r = x + jax.nn.relu(h2)
    mean = r.mean(-1, keepdims=True)
    var = ((r - mean) ** 2).mean(-1, keepdims=True)
    return (r - mean) / jnp.sqrt(var + 1e-5) * gamma + beta


if __name__ == "__main__":
    # Small shapes consistent with the module: hidden_size=32, input_size (seq) = 8, batch = 2.
    B, S, H = 2, 8, 32

    key = jax.random.PRNGKey(0)
    kx, k1, kb1, k2, kb2, kg, kb = jax.random.split(key, 7)

    x = jax.random.normal(kx, (B, S, H), dtype=jnp.float32)
    w1 = jax.random.normal(k1, (2 * S, S, 3), dtype=jnp.float32) * 0.1   # Conv1d(S, 2S, k=3)
    b1 = jax.random.normal(kb1, (2 * S,), dtype=jnp.float32) * 0.1
    w2 = jax.random.normal(k2, (S, 2 * S), dtype=jnp.float32) * 0.1      # Conv1d(2S, S, k=1)
    b2 = jax.random.normal(kb2, (S,), dtype=jnp.float32) * 0.1
    gamma = 1.0 + 0.1 * jax.random.normal(kg, (H,), dtype=jnp.float32)   # LayerNorm(H)
    beta = 0.1 * jax.random.normal(kb, (H,), dtype=jnp.float32)

    # Auto num_blocks -> 1 at this toy size (whole batch in one lane-dense grid step).
    conv_layer = make_conv_layer(w1, b1, w2, b2, gamma, beta, batch=B)

    out = conv_layer(x)
    out = jax.block_until_ready(out)

    ref = conv_layer_ref(x, w1, b1, w2, b2, gamma, beta)
    assert out.shape == (B, S, H)
    assert jnp.allclose(out, ref, rtol=1e-4, atol=1e-4), \
        f"max abs err {jnp.max(jnp.abs(out - ref))}"

    print("KERNEL_OK")
</pallas_src>

<mosaic_0001>
module attributes {stable_mosaic.version = 11 : i64} {
  func.func @conv_layer_kernel(%arg0: i32, %arg1: memref<1x8x128xf32, #tpu.memory_space<vmem>>, %arg2: memref<8x24xf32, #tpu.memory_space<vmem>>, %arg3: memref<8x1xf32, #tpu.memory_space<vmem>>, %arg4: memref<128x4xf32, #tpu.memory_space<vmem>>, %arg5: memref<4x128xf32, #tpu.memory_space<vmem>>, %arg6: memref<1x128xf32, #tpu.memory_space<vmem>>, %arg7: memref<1x128xf32, #tpu.memory_space<vmem>>, %arg8: memref<1x128xf32, #tpu.memory_space<vmem>>, %arg9: memref<1x128xf32, #tpu.memory_space<vmem>>, %arg10: memref<1x8x128xf32, #tpu.memory_space<vmem>>) attributes {dimension_semantics = [#tpu.dimension_semantics<parallel>], iteration_bounds = array<i64: 1>, scalar_prefetch = 0 : i64, scratch_operands = 0 : i64, tpu.core_type = #tpu.core_type<tc>, window_params = [{transform_indices = @transform_0, window_bounds = array<i64: 1, 8, 128>}, {pipeline_mode = #tpu.pipeline_mode<synchronous>, transform_indices = @transform_1, window_bounds = array<i64: 8, 24>}, {pipeline_mode = #tpu.pipeline_mode<synchronous>, transform_indices = @transform_2, window_bounds = array<i64: 8, 1>}, {pipeline_mode = #tpu.pipeline_mode<synchronous>, transform_indices = @transform_3, window_bounds = array<i64: 128, 4>}, {pipeline_mode = #tpu.pipeline_mode<synchronous>, transform_indices = @transform_4, window_bounds = array<i64: 4, 128>}, {pipeline_mode = #tpu.pipeline_mode<synchronous>, transform_indices = @transform_5, window_bounds = array<i64: 1, 128>}, {pipeline_mode = #tpu.pipeline_mode<synchronous>, transform_indices = @transform_6, window_bounds = array<i64: 1, 128>}, {pipeline_mode = #tpu.pipeline_mode<synchronous>, transform_indices = @transform_7, window_bounds = array<i64: 1, 128>}, {pipeline_mode = #tpu.pipeline_mode<synchronous>, transform_indices = @transform_8, window_bounds = array<i64: 1, 128>}, {transform_indices = @transform_9, window_bounds = array<i64: 1, 8, 128>}]} {
    %c0 = arith.constant 0 : index
    %c0_0 = arith.constant 0 : index
    %c0_1 = arith.constant 0 : index
    %0 = vector.load %arg1[%c0, %c0_0, %c0_1] : memref<1x8x128xf32, #tpu.memory_space<vmem>>, vector<1x8x128xf32>
    %1 = vector.shape_cast %0 : vector<1x8x128xf32> to vector<8x128xf32>
    %c1_i32 = arith.constant 1 : i32
    %2 = tpu.dynamic_rotate %1 by %c1_i32 dim 1 : vector<8x128xf32>, i32 -> vector<8x128xf32>
    %c0_2 = arith.constant 0 : index
    %c0_3 = arith.constant 0 : index
    %3 = vector.load %arg8[%c0_2, %c0_3] : memref<1x128xf32, #tpu.memory_space<vmem>>, vector<1x128xf32>
    %4 = vector.broadcast %3 : vector<1x128xf32> to vector<8x128xf32>
    %5 = arith.mulf %2, %4 : vector<8x128xf32>
    %c127_i32 = arith.constant 127 : i32
    %6 = tpu.dynamic_rotate %1 by %c127_i32 dim 1 : vector<8x128xf32>, i32 -> vector<8x128xf32>
    %c0_4 = arith.constant 0 : index
    %c0_5 = arith.constant 0 : index
    %7 = vector.load %arg9[%c0_4, %c0_5] : memref<1x128xf32, #tpu.memory_space<vmem>>, vector<1x128xf32>
    %8 = vector.broadcast %7 : vector<1x128xf32> to vector<8x128xf32>
    %9 = arith.mulf %6, %8 : vector<8x128xf32>
    %10 = tpu.concatenate %5, %1, %9 in 0 : vector<8x128xf32>, vector<8x128xf32>, vector<8x128xf32> -> vector<24x128xf32>
    %c0_6 = arith.constant 0 : index
    %c0_7 = arith.constant 0 : index
    %11 = vector.load %arg2[%c0_6, %c0_7] : memref<8x24xf32, #tpu.memory_space<vmem>>, vector<8x24xf32>
    %cst = arith.constant dense<0.000000e+00> : vector<8x128xf32>
    %12 = tpu.matmul %11, %10, %cst {dimension_numbers = #tpu.dot_dimension_numbers<[1], [0], [0], [1], [0, 0, 1, 1], [], []>} : vector<8x24xf32>, vector<24x128xf32>, vector<8x128xf32> -> vector<8x128xf32>
    %c0_8 = arith.constant 0 : index
    %c0_9 = arith.constant 0 : index
    %13 = vector.load %arg3[%c0_8, %c0_9] : memref<8x1xf32, #tpu.memory_space<vmem>>, vector<8x1xf32>
    %14 = vector.broadcast %13 : vector<8x1xf32> to vector<8x128xf32>
    %15 = arith.addf %12, %14 : vector<8x128xf32>
    %cst_10 = arith.constant 0.000000e+00 : f32
    %16 = vector.broadcast %cst_10 : f32 to vector<8x128xf32>
    %17 = arith.maximumf %15, %16 : vector<8x128xf32>
    %18 = arith.addf %1, %17 : vector<8x128xf32>
    %c0_11 = arith.constant 0 : index
    %c0_12 = arith.constant 0 : index
    %19 = vector.load %arg4[%c0_11, %c0_12] : memref<128x4xf32, #tpu.memory_space<vmem>>, vector<128x4xf32>
    %cst_13 = arith.constant dense<0.000000e+00> : vector<8x4xf32>
    %20 = tpu.matmul %18, %19, %cst_13 {dimension_numbers = #tpu.dot_dimension_numbers<[1], [0], [0], [1], [0, 0, 1, 1], [], []>} : vector<8x128xf32>, vector<128x4xf32>, vector<8x4xf32> -> vector<8x4xf32>
    %c0_14 = arith.constant 0 : index
    %c0_15 = arith.constant 0 : index
    %21 = vector.load %arg5[%c0_14, %c0_15] : memref<4x128xf32, #tpu.memory_space<vmem>>, vector<4x128xf32>
    %cst_16 = arith.constant dense<0.000000e+00> : vector<8x128xf32>
    %22 = tpu.matmul %20, %21, %cst_16 {dimension_numbers = #tpu.dot_dimension_numbers<[1], [0], [0], [1], [0, 0, 1, 1], [], []>} : vector<8x4xf32>, vector<4x128xf32>, vector<8x128xf32> -> vector<8x128xf32>
    %23 = arith.subf %18, %22 : vector<8x128xf32>
    %24 = arith.mulf %23, %23 : vector<8x128xf32>
    %c0_17 = arith.constant 0 : index
    %c0_18 = arith.constant 0 : index
    %25 = vector.load %arg4[%c0_17, %c0_18] : memref<128x4xf32, #tpu.memory_space<vmem>>, vector<128x4xf32>
    %cst_19 = arith.constant dense<0.000000e+00> : vector<8x4xf32>
    %26 = tpu.matmul %24, %25, %cst_19 {dimension_numbers = #tpu.dot_dimension_numbers<[1], [0], [0], [1], [0, 0, 1, 1], [], []>} : vector<8x128xf32>, vector<128x4xf32>, vector<8x4xf32> -> vector<8x4xf32>
    %c0_20 = arith.constant 0 : index
    %c0_21 = arith.constant 0 : index
    %27 = vector.load %arg5[%c0_20, %c0_21] : memref<4x128xf32, #tpu.memory_space<vmem>>, vector<4x128xf32>
    %cst_22 = arith.constant dense<0.000000e+00> : vector<8x128xf32>
    %28 = tpu.matmul %26, %27, %cst_22 {dimension_numbers = #tpu.dot_dimension_numbers<[1], [0], [0], [1], [0, 0, 1, 1], [], []>} : vector<8x4xf32>, vector<4x128xf32>, vector<8x128xf32> -> vector<8x128xf32>
    %cst_23 = arith.constant 9.99999974E-6 : f32
    %29 = vector.broadcast %cst_23 : f32 to vector<8x128xf32>
    %30 = arith.addf %28, %29 : vector<8x128xf32>
    %31 = math.rsqrt %30 : vector<8x128xf32>
    %32 = arith.mulf %23, %31 : vector<8x128xf32>
    %c0_24 = arith.constant 0 : index
    %c0_25 = arith.constant 0 : index
    %33 = vector.load %arg6[%c0_24, %c0_25] : memref<1x128xf32, #tpu.memory_space<vmem>>, vector<1x128xf32>
    %34 = vector.broadcast %33 : vector<1x128xf32> to vector<8x128xf32>
    %35 = arith.mulf %32, %34 : vector<8x128xf32>
    %c0_26 = arith.constant 0 : index
    %c0_27 = arith.constant 0 : index
    %36 = vector.load %arg7[%c0_26, %c0_27] : memref<1x128xf32, #tpu.memory_space<vmem>>, vector<1x128xf32>
    %37 = vector.broadcast %36 : vector<1x128xf32> to vector<8x128xf32>
    %38 = arith.addf %35, %37 : vector<8x128xf32>
    %c0_28 = arith.constant 0 : index
    %c0_29 = arith.constant 0 : index
    %c0_30 = arith.constant 0 : index
    %39 = vector.load %arg10[%c0_28, %c0_29, %c0_30] : memref<1x8x128xf32, #tpu.memory_space<vmem>>, vector<1x8x128xf32>
    %40 = vector.shape_cast %39 : vector<1x8x128xf32> to vector<8x128xf32>
    %41 = vector.shape_cast %38 : vector<8x128xf32> to vector<1x8x128xf32>
    tpu.vector_store %arg10[%c0_28, %c0_29, %c0_30], %41 {strides = array<i32>} : memref<1x8x128xf32, #tpu.memory_space<vmem>>, vector<1x8x128xf32>,
    return
  }
  func.func @transform_0(%arg0: i32) -> (i32, i32, i32) {
    %c0_i32 = arith.constant 0 : i32
    %c0_i32_0 = arith.constant 0 : i32
    %c0_i32_1 = arith.constant 0 : i32
    return %arg0, %c0_i32, %c0_i32_0 : i32, i32, i32
  }
  func.func @transform_1(%arg0: i32) -> (i32, i32) {
    %c0_i32 = arith.constant 0 : i32
    %c0_i32_0 = arith.constant 0 : i32
    %c0_i32_1 = arith.constant 0 : i32
    return %c0_i32, %c0_i32_0 : i32, i32
  }
  func.func @transform_2(%arg0: i32) -> (i32, i32) {
    %c0_i32 = arith.constant 0 : i32
    %c0_i32_0 = arith.constant 0 : i32
    %c0_i32_1 = arith.constant 0 : i32
    return %c0_i32, %c0_i32_0 : i32, i32
  }
  func.func @transform_3(%arg0: i32) -> (i32, i32) {
    %c0_i32 = arith.constant 0 : i32
    %c0_i32_0 = arith.constant 0 : i32
    %c0_i32_1 = arith.constant 0 : i32
    return %c0_i32, %c0_i32_0 : i32, i32
  }
  func.func @transform_4(%arg0: i32) -> (i32, i32) {
    %c0_i32 = arith.constant 0 : i32
    %c0_i32_0 = arith.constant 0 : i32
    %c0_i32_1 = arith.constant 0 : i32
    return %c0_i32, %c0_i32_0 : i32, i32
  }
  func.func @transform_5(%arg0: i32) -> (i32, i32) {
    %c0_i32 = arith.constant 0 : i32
    %c0_i32_0 = arith.constant 0 : i32
    %c0_i32_1 = arith.constant 0 : i32
    return %c0_i32, %c0_i32_0 : i32, i32
  }
  func.func @transform_6(%arg0: i32) -> (i32, i32) {
    %c0_i32 = arith.constant 0 : i32
    %c0_i32_0 = arith.constant 0 : i32
    %c0_i32_1 = arith.constant 0 : i32
    return %c0_i32, %c0_i32_0 : i32, i32
  }
  func.func @transform_7(%arg0: i32) -> (i32, i32) {
    %c0_i32 = arith.constant 0 : i32
    %c0_i32_0 = arith.constant 0 : i32
    %c0_i32_1 = arith.constant 0 : i32
    return %c0_i32, %c0_i32_0 : i32, i32
  }
  func.func @transform_8(%arg0: i32) -> (i32, i32) {
    %c0_i32 = arith.constant 0 : i32
    %c0_i32_0 = arith.constant 0 : i32
    %c0_i32_1 = arith.constant 0 : i32
    return %c0_i32, %c0_i32_0 : i32, i32
  }
  func.func @transform_9(%arg0: i32) -> (i32, i32, i32) {
    %c0_i32 = arith.constant 0 : i32
    %c0_i32_0 = arith.constant 0 : i32
    %c0_i32_1 = arith.constant 0 : i32
    return %arg0, %c0_i32, %c0_i32_0 : i32, i32, i32
  }
}

module attributes {stable_mosaic.version = 11 : i64} {
  func.func @conv_layer_kernel(%arg0: i32, %arg1: memref<1x8x128xf32, #tpu.memory_space<vmem>>, %arg2: memref<8x24xf32, #tpu.memory_space<vmem>>, %arg3: memref<8x1xf32, #tpu.memory_space<vmem>>, %arg4: memref<128x4xf32, #tpu.memory_space<vmem>>, %arg5: memref<4x128xf32, #tpu.memory_space<vmem>>, %arg6: memref<1x128xf32, #tpu.memory_space<vmem>>, %arg7: memref<1x128xf32, #tpu.memory_space<vmem>>, %arg8: memref<1x128xf32, #tpu.memory_space<vmem>>, %arg9: memref<1x128xf32, #tpu.memory_space<vmem>>, %arg10: memref<1x8x128xf32, #tpu.memory_space<vmem>>) attributes {dimension_semantics = [#tpu.dimension_semantics<parallel>], iteration_bounds = array<i64: 1>, scalar_prefetch = 0 : i64, scratch_operands = 0 : i64, tpu.core_type = #tpu.core_type<tc>, window_params = [{transform_indices = @transform_0, window_bounds = array<i64: 1, 8, 128>}, {pipeline_mode = #tpu.pipeline_mode<synchronous>, transform_indices = @transform_1, window_bounds = array<i64: 8, 24>}, {pipeline_mode = #tpu.pipeline_mode<synchronous>, transform_indices = @transform_2, window_bounds = array<i64: 8, 1>}, {pipeline_mode = #tpu.pipeline_mode<synchronous>, transform_indices = @transform_3, window_bounds = array<i64: 128, 4>}, {pipeline_mode = #tpu.pipeline_mode<synchronous>, transform_indices = @transform_4, window_bounds = array<i64: 4, 128>}, {pipeline_mode = #tpu.pipeline_mode<synchronous>, transform_indices = @transform_5, window_bounds = array<i64: 1, 128>}, {pipeline_mode = #tpu.pipeline_mode<synchronous>, transform_indices = @transform_6, window_bounds = array<i64: 1, 128>}, {pipeline_mode = #tpu.pipeline_mode<synchronous>, transform_indices = @transform_7, window_bounds = array<i64: 1, 128>}, {pipeline_mode = #tpu.pipeline_mode<synchronous>, transform_indices = @transform_8, window_bounds = array<i64: 1, 128>}, {transform_indices = @transform_9, window_bounds = array<i64: 1, 8, 128>}]} {
    %c0 = arith.constant 0 : index
    %c0_0 = arith.constant 0 : index
    %c0_1 = arith.constant 0 : index
    %0 = vector.load %arg1[%c0, %c0_0, %c0_1] : memref<1x8x128xf32, #tpu.memory_space<vmem>>, vector<1x8x128xf32>
    %1 = vector.shape_cast %0 : vector<1x8x128xf32> to vector<8x128xf32>
    %c1_i32 = arith.constant 1 : i32
    %2 = tpu.dynamic_rotate %1 by %c1_i32 dim 1 : vector<8x128xf32>, i32 -> vector<8x128xf32>
    %c0_2 = arith.constant 0 : index
    %c0_3 = arith.constant 0 : index
    %3 = vector.load %arg8[%c0_2, %c0_3] : memref<1x128xf32, #tpu.memory_space<vmem>>, vector<1x128xf32>
    %4 = vector.broadcast %3 : vector<1x128xf32> to vector<8x128xf32>
    %5 = arith.mulf %2, %4 : vector<8x128xf32>
    %c127_i32 = arith.constant 127 : i32
    %6 = tpu.dynamic_rotate %1 by %c127_i32 dim 1 : vector<8x128xf32>, i32 -> vector<8x128xf32>
    %c0_4 = arith.constant 0 : index
    %c0_5 = arith.constant 0 : index
    %7 = vector.load %arg9[%c0_4, %c0_5] : memref<1x128xf32, #tpu.memory_space<vmem>>, vector<1x128xf32>
    %8 = vector.broadcast %7 : vector<1x128xf32> to vector<8x128xf32>
    %9 = arith.mulf %6, %8 : vector<8x128xf32>
    %10 = tpu.concatenate %5, %1, %9 in 0 : vector<8x128xf32>, vector<8x128xf32>, vector<8x128xf32> -> vector<24x128xf32>
    %c0_6 = arith.constant 0 : index
    %c0_7 = arith.constant 0 : index
    %11 = vector.load %arg2[%c0_6, %c0_7] : memref<8x24xf32, #tpu.memory_space<vmem>>, vector<8x24xf32>
    %cst = arith.constant dense<0.000000e+00> : vector<8x128xf32>
    %12 = tpu.matmul %11, %10, %cst {dimension_numbers = #tpu.dot_dimension_numbers<[1], [0], [0], [1], [0, 0, 1, 1], [], []>} : vector<8x24xf32>, vector<24x128xf32>, vector<8x128xf32> -> vector<8x128xf32>
    %c0_8 = arith.constant 0 : index
    %c0_9 = arith.constant 0 : index
    %13 = vector.load %arg3[%c0_8, %c0_9] : memref<8x1xf32, #tpu.memory_space<vmem>>, vector<8x1xf32>
    %14 = vector.broadcast %13 : vector<8x1xf32> to vector<8x128xf32>
    %15 = arith.addf %12, %14 : vector<8x128xf32>
    %cst_10 = arith.constant 0.000000e+00 : f32
    %16 = vector.broadcast %cst_10 : f32 to vector<8x128xf32>
    %17 = arith.maximumf %15, %16 : vector<8x128xf32>
    %18 = arith.addf %1, %17 : vector<8x128xf32>
    %c0_11 = arith.constant 0 : index
    %c0_12 = arith.constant 0 : index
    %19 = vector.load %arg4[%c0_11, %c0_12] : memref<128x4xf32, #tpu.memory_space<vmem>>, vector<128x4xf32>
    %cst_13 = arith.constant dense<0.000000e+00> : vector<8x4xf32>
    %20 = tpu.matmul %18, %19, %cst_13 {dimension_numbers = #tpu.dot_dimension_numbers<[1], [0], [0], [1], [0, 0, 1, 1], [], []>} : vector<8x128xf32>, vector<128x4xf32>, vector<8x4xf32> -> vector<8x4xf32>
    %c0_14 = arith.constant 0 : index
    %c0_15 = arith.constant 0 : index
    %21 = vector.load %arg5[%c0_14, %c0_15] : memref<4x128xf32, #tpu.memory_space<vmem>>, vector<4x128xf32>
    %cst_16 = arith.constant dense<0.000000e+00> : vector<8x128xf32>
    %22 = tpu.matmul %20, %21, %cst_16 {dimension_numbers = #tpu.dot_dimension_numbers<[1], [0], [0], [1], [0, 0, 1, 1], [], []>} : vector<8x4xf32>, vector<4x128xf32>, vector<8x128xf32> -> vector<8x128xf32>
    %23 = arith.subf %18, %22 : vector<8x128xf32>
    %24 = arith.mulf %23, %23 : vector<8x128xf32>
    %c0_17 = arith.constant 0 : index
    %c0_18 = arith.constant 0 : index
    %25 = vector.load %arg4[%c0_17, %c0_18] : memref<128x4xf32, #tpu.memory_space<vmem>>, vector<128x4xf32>
    %cst_19 = arith.constant dense<0.000000e+00> : vector<8x4xf32>
    %26 = tpu.matmul %24, %25, %cst_19 {dimension_numbers = #tpu.dot_dimension_numbers<[1], [0], [0], [1], [0, 0, 1, 1], [], []>} : vector<8x128xf32>, vector<128x4xf32>, vector<8x4xf32> -> vector<8x4xf32>
    %c0_20 = arith.constant 0 : index
    %c0_21 = arith.constant 0 : index
    %27 = vector.load %arg5[%c0_20, %c0_21] : memref<4x128xf32, #tpu.memory_space<vmem>>, vector<4x128xf32>
    %cst_22 = arith.constant dense<0.000000e+00> : vector<8x128xf32>
    %28 = tpu.matmul %26, %27, %cst_22 {dimension_numbers = #tpu.dot_dimension_numbers<[1], [0], [0], [1], [0, 0, 1, 1], [], []>} : vector<8x4xf32>, vector<4x128xf32>, vector<8x128xf32> -> vector<8x128xf32>
    %cst_23 = arith.constant 9.99999974E-6 : f32
    %29 = vector.broadcast %cst_23 : f32 to vector<8x128xf32>
    %30 = arith.addf %28, %29 : vector<8x128xf32>
    %31 = math.rsqrt %30 : vector<8x128xf32>
    %32 = arith.mulf %23, %31 : vector<8x128xf32>
    %c0_24 = arith.constant 0 : index
    %c0_25 = arith.constant 0 : index
    %33 = vector.load %arg6[%c0_24, %c0_25] : memref<1x128xf32, #tpu.memory_space<vmem>>, vector<1x128xf32>
    %34 = vector.broadcast %33 : vector<1x128xf32> to vector<8x128xf32>
    %35 = arith.mulf %32, %34 : vector<8x128xf32>
    %c0_26 = arith.constant 0 : index
    %c0_27 = arith.constant 0 : index
    %36 = vector.load %arg7[%c0_26, %c0_27] : memref<1x128xf32, #tpu.memory_space<vmem>>, vector<1x128xf32>
    %37 = vector.broadcast %36 : vector<1x128xf32> to vector<8x128xf32>
    %38 = arith.addf %35, %37 : vector<8x128xf32>
    %c0_28 = arith.constant 0 : index
    %c0_29 = arith.constant 0 : index
    %c0_30 = arith.constant 0 : index
    %39 = vector.load %arg10[%c0_28, %c0_29, %c0_30] : memref<1x8x128xf32, #tpu.memory_space<vmem>>, vector<1x8x128xf32>
    %40 = vector.shape_cast %39 : vector<1x8x128xf32> to vector<8x128xf32>
    %41 = vector.shape_cast %38 : vector<8x128xf32> to vector<1x8x128xf32>
    tpu.vector_store %arg10[%c0_28, %c0_29, %c0_30], %41 {strides = array<i32>} : memref<1x8x128xf32, #tpu.memory_space<vmem>>, vector<1x8x128xf32>,
    return
  }
  func.func @transform_0(%arg0: i32) -> (i32, i32, i32) {
    %c0_i32 = arith.constant 0 : i32
    %c0_i32_0 = arith.constant 0 : i32
    %c0_i32_1 = arith.constant 0 : i32
    return %arg0, %c0_i32, %c0_i32_0 : i32, i32, i32
  }
  func.func @transform_1(%arg0: i32) -> (i32, i32) {
    %c0_i32 = arith.constant 0 : i32
    %c0_i32_0 = arith.constant 0 : i32
    %c0_i32_1 = arith.constant 0 : i32
    return %c0_i32, %c0_i32_0 : i32, i32
  }
  func.func @transform_2(%arg0: i32) -> (i32, i32) {
    %c0_i32 = arith.constant 0 : i32
    %c0_i32_0 = arith.constant 0 : i32
    %c0_i32_1 = arith.constant 0 : i32
    return %c0_i32, %c0_i32_0 : i32, i32
  }
  func.func @transform_3(%arg0: i32) -> (i32, i32) {
    %c0_i32 = arith.constant 0 : i32
    %c0_i32_0 = arith.constant 0 : i32
    %c0_i32_1 = arith.constant 0 : i32
    return %c0_i32, %c0_i32_0 : i32, i32
  }
  func.func @transform_4(%arg0: i32) -> (i32, i32) {
    %c0_i32 = arith.constant 0 : i32
    %c0_i32_0 = arith.constant 0 : i32
    %c0_i32_1 = arith.constant 0 : i32
    return %c0_i32, %c0_i32_0 : i32, i32
  }
  func.func @transform_5(%arg0: i32) -> (i32, i32) {
    %c0_i32 = arith.constant 0 : i32
    %c0_i32_0 = arith.constant 0 : i32
    %c0_i32_1 = arith.constant 0 : i32
    return %c0_i32, %c0_i32_0 : i32, i32
  }
  func.func @transform_6(%arg0: i32) -> (i32, i32) {
    %c0_i32 = arith.constant 0 : i32
    %c0_i32_0 = arith.constant 0 : i32
    %c0_i32_1 = arith.constant 0 : i32
    return %c0_i32, %c0_i32_0 : i32, i32
  }
  func.func @transform_7(%arg0: i32) -> (i32, i32) {
    %c0_i32 = arith.constant 0 : i32
    %c0_i32_0 = arith.constant 0 : i32
    %c0_i32_1 = arith.constant 0 : i32
    return %c0_i32, %c0_i32_0 : i32, i32
  }
  func.func @transform_8(%arg0: i32) -> (i32, i32) {
    %c0_i32 = arith.constant 0 : i32
    %c0_i32_0 = arith.constant 0 : i32
    %c0_i32_1 = arith.constant 0 : i32
    return %c0_i32, %c0_i32_0 : i32, i32
  }
  func.func @transform_9(%arg0: i32) -> (i32, i32, i32) {
    %c0_i32 = arith.constant 0 : i32
    %c0_i32_0 = arith.constant 0 : i32
    %c0_i32_1 = arith.constant 0 : i32
    return %arg0, %c0_i32, %c0_i32_0 : i32, i32, i32
  }
}

</mosaic_0001>

<llo_original>
// kernel: apply_jit.1
$region0: #{apply_jit.1}
  #allocation0 [shape = 'u32[]', space=smem, size = 0x4, offset = 0x4, fixed_abs, tag = 'smem constant byte address 0x4 - core index']
  #allocation1 [shape = 'u32[144,128]{1,0:T(1,128)}', space=vmem, size = 0x12000, scoped, tag = 'internal scratch']
  %s0 = inlined_call_operand.vmem [shape: f32[1,8,128], index: 0, kind: input, shape index: {}]
  %s1 = inlined_call_operand.vmem [shape: f32[8,24], index: 1, kind: input, shape index: {}]
  %s2 = inlined_call_operand.vmem [shape: f32[8,1], index: 2, kind: input, shape index: {}]
  %s3 = inlined_call_operand.hbm [shape: f32[128,4], index: 3, kind: input, shape index: {}]
  %s4 = inlined_call_operand.vmem [shape: f32[4,128], index: 4, kind: input, shape index: {}]
  %s5 = inlined_call_operand.vmem [shape: f32[1,128], index: 5, kind: input, shape index: {}]
  %s6 = inlined_call_operand.vmem [shape: f32[1,128], index: 6, kind: input, shape index: {}]
  %s7 = inlined_call_operand.vmem [shape: f32[1,128], index: 7, kind: input, shape index: {}]
  %s8 = inlined_call_operand.vmem [shape: f32[1,128], index: 8, kind: input, shape index: {}]
  %s9 = inlined_call_operand.vmem [shape: f32[1,8,128], index: 9, kind: output, shape index: {}]
  %s10 = sld [smem:[#allocation0]]
  $region50: #{apply_jit.1} parent=0
    _
  %s12 = ssub.s32 1, %s10
  %s13 = scalar_select 0, %s12, %s10
  $region1: #{apply_jit.1} parent=0
    #allocation2 [shape = 'u8[65536]{0}', space=vmem, size = 0x10000, scoped, tag = 'input window, operand 3, single buffered']
    #allocation3 [shape = 's32[1]{0}', space=sflag, size = 0x4, scoped, tag = 'scoped memory for apply_jit.1']
    %14 = vsyncpa [#allocation3], 0
    // Predicated region
    $region2: #{apply_jit.1} parent=1 // pred_check
      _
    $region3: #{apply_jit.1} parent=1 // pred_check_branch
      %16 = sbr.rel (0) target = $region5
    $region4: #{apply_jit.1} parent=1 // pred_region
      _
    $region5: #{apply_jit.1} parent=1 // pred_fallthru
      _
    // Predicated region
    $region6: #{apply_jit.1} parent=1 // pred_check
      _
    $region7: #{apply_jit.1} parent=1 // pred_check_branch
      %18 = sbr.rel (0) target = $region9
    $region8: #{apply_jit.1} parent=1 // pred_region
      _
    $region9: #{apply_jit.1} parent=1 // pred_fallthru
      _
    // Predicated region
    $region10: #{apply_jit.1} parent=1 // pred_check
      _
    $region11: #{apply_jit.1} parent=1 // pred_check_branch
      %20 = sbr.rel (0) target = $region13
    $region12: #{apply_jit.1} parent=1 // pred_region
      _
    $region13: #{apply_jit.1} parent=1 // pred_fallthru
      _
    // Predicated region
    $region14: #{apply_jit.1} parent=1 // pred_check
      _
    $region15: #{apply_jit.1} parent=1 // pred_check_branch
      %22 = sbr.rel (0) target = $region17
    $region16: #{apply_jit.1} parent=1 // pred_region
      %s24 = ssub.s32 2048, 2048
      %25 = vsyncadd [#allocation3], %s24
      %s26 = sshll.u32 [#allocation2], 4
      %s27 = int_to_ptr.vmem [resolvable:$true] %s26
      %32 = dma.hbm_to_vmem [thread:$0]  %s3, 2048, %s27, [#allocation3], 128, 128, 8
    $region17: #{apply_jit.1} parent=1 // pred_fallthru
      _
    // Predicated region
    $region18: #{apply_jit.1} parent=1 // pred_check
      _
    $region19: #{apply_jit.1} parent=1 // pred_check_branch
      %34 = sbr.rel (0) target = $region21
    $region20: #{apply_jit.1} parent=1 // pred_region
      _
    $region21: #{apply_jit.1} parent=1 // pred_fallthru
      _
    // Predicated region
    $region22: #{apply_jit.1} parent=1 // pred_check
      _
    $region23: #{apply_jit.1} parent=1 // pred_check_branch
      %36 = sbr.rel (0) target = $region25
    $region24: #{apply_jit.1} parent=1 // pred_region
      _
    $region25: #{apply_jit.1} parent=1 // pred_fallthru
      _
    // Predicated region
    $region26: #{apply_jit.1} parent=1 // pred_check
      _
    $region27: #{apply_jit.1} parent=1 // pred_check_branch
      %38 = sbr.rel (0) target = $region29
    $region28: #{apply_jit.1} parent=1 // pred_region
      _
    $region29: #{apply_jit.1} parent=1 // pred_fallthru
      _
    // Predicated region
    $region30: #{apply_jit.1} parent=1 // pred_check
      _
    $region31: #{apply_jit.1} parent=1 // pred_check_branch
      %40 = sbr.rel (0) target = $region33
    $region32: #{apply_jit.1} parent=1 // pred_region
      _
    $region33: #{apply_jit.1} parent=1 // pred_fallthru
      _
    // Predicated region
    $region34: #{apply_jit.1} parent=1 // pred_check
      _
    $region35: #{apply_jit.1} parent=1 // pred_check_branch
      %42 = sbr.rel (0) target = $region37
    $region36: #{apply_jit.1} parent=1 // pred_region
      _
    $region37: #{apply_jit.1} parent=1 // pred_fallthru
      _
    // Predicated region
    $region38: #{apply_jit.1} parent=1 // pred_check
      _
    $region39: #{apply_jit.1} parent=1 // pred_check_branch
      %44 = sbr.rel (0) target = $region41
    $region40: #{apply_jit.1} parent=1 // pred_region
      %45 = dma.done [#allocation3], 2048
    $region41: #{apply_jit.1} parent=1 // pred_fallthru
      _
    %v46 = vld [vmem:[%s0] sm:$0xff]
    %47 = vrot.lane.b32.xlu0 %v46, 1
    %v48 = vpop.permute.xlu0 %47
    %v49 = vld [vmem:[%s7] sm:$0x1]
    %v51 = vlaneseq
    %v52 = vshrl.u32 %v51, 7
    %v53 = vsub.s32 0, %v52
    %v54 = vrot.slane %v49, %v53
    %v56 = vmul.f32 %v48, %v54
    %57 = vrot.lane.b32.xlu0 %v46, 127
    %v58 = vpop.permute.xlu0 %57
    %v59 = vld [vmem:[%s8] sm:$0x1]
    %v61 = vlaneseq
    %v62 = vshrl.u32 %v61, 7
    %v63 = vsub.s32 0, %v62
    %v64 = vrot.slane %v59, %v63
    %v66 = vmul.f32 %v58, %v64
    %v67 = vld [vmem:[%s1] sm:$0xff]
    %v68 = vld [vmem:[%s2] sm:$0xff]
    %70 = vset.pattern.permute.xlu0 0
    %71 = vperm.xlu0 %70, %v68
    %v72 = vpop.permute.xlu0 %71
    %vm74 = vcmask 195584
    %v76 = vsel %vm74, %v67, 0
    %78 = vmatprep.subr.mxu0 0.0
    %79 = vmatpush1.msra.mxu0 %v56
    %80 = vmatprep.subr.mxu0 0.0
    %81 = vmatpush1.msra.mxu0 %v46
    %82 = vmatprep.subr.mxu0 0.0
    %83 = vmatpush1.msra.mxu0 %v66
    %84 = vmatprep.subr.mxu0 0.0
    %85 = vmatpush1.msra.mxu0 0.0
    %86 = vmatprep.subr.mxu0 0.0
    %87 = vmatpush1.msra.mxu0 0.0
    %88 = vmatprep.subr.mxu0 0.0
    %89 = vmatpush1.msra.mxu0 0.0
    %90 = vmatprep.subr.mxu0 0.0
    %91 = vmatpush1.msra.mxu0 0.0
    %92 = vmatprep.subr.mxu0 0.0
    %93 = vmatpush1.msra.mxu0 0.0
    %94 = vmatprep.subr.mxu0 0.0
    %95 = vmatpush1.msra.mxu0 0.0
    %96 = vmatprep.subr.mxu0 0.0
    %97 = vmatpush1.msra.mxu0 0.0
    %98 = vmatprep.subr.mxu0 0.0
    %99 = vmatpush1.msra.mxu0 0.0
    %100 = vmatprep.subr.mxu0 0.0
    %101 = vmatpush1.msra.mxu0 0.0
    %102 = vmatprep.subr.mxu0 0.0
    %103 = vmatpush1.msra.mxu0 0.0
    %104 = vmatprep.subr.mxu0 0.0
    %105 = vmatpush1.msra.mxu0 0.0
    %106 = vmatprep.subr.mxu0 0.0
    %107 = vmatpush1.msra.mxu0 0.0
    %108 = vmatprep.subr.mxu0 0.0
    %109 = vmatpush1.msra.mxu0 0.0
    %110 = vmatprep.subr.mxu0 0.0
    %111 = vmatpush1.msra.mxu0 0.0
    %112 = vmatprep.subr.mxu0 0.0
    %113 = vmatpush1.msra.mxu0 0.0
    %114 = vmatprep.subr.mxu0 0.0
    %115 = vmatpush1.msra.mxu0 0.0
    %116 = vmatprep.subr.mxu0 0.0
    %117 = vmatpush1.msra.mxu0 0.0
    %118 = vmatprep.subr.mxu0 0.0
    %119 = vmatpush1.msra.mxu0 0.0
    %120 = vmatprep.subr.mxu0 0.0
    %121 = vmatpush1.msra.mxu0 0.0
    %122 = vmatprep.subr.mxu0 0.0
    %123 = vmatpush1.msra.mxu0 0.0
    %124 = vmatprep.subr.mxu0 0.0
    %125 = vmatpush1.msra.mxu0 0.0
    %126 = vmatprep.subr.mxu0 0.0
    %127 = vmatpush1.msra.mxu0 0.0
    %128 = vmatprep.subr.mxu0 0.0
    %129 = vmatpush1.msra.mxu0 0.0
    %130 = vmatprep.subr.mxu0 0.0
    %131 = vmatpush1.msra.mxu0 0.0
    %132 = vmatprep.subr.mxu0 0.0
    %133 = vmatpush1.msra.mxu0 0.0
    %134 = vmatprep.subr.mxu0 0.0
    %135 = vmatpush1.msra.mxu0 0.0
    %136 = vmatprep.subr.mxu0 0.0
    %137 = vmatpush1.msra.mxu0 0.0
    %138 = vmatprep.subr.mxu0 0.0
    %139 = vmatpush1.msra.mxu0 0.0
    %140 = vmatprep.subr.mxu0 0.0
    %141 = vmatpush1.msra.mxu0 0.0
    %142 = vmatprep.mubr.f32.mxu0 0.0
    %143 = vmatmul.mubr.f32.gmra.mrb[0].mxu0 %v76
    %v144 = vpop.f32.mrb[0].mxu0
    %v145 = vadd.f32 %v72, %v144
    %v146 = vpop.f32.mrb[0].mxu0
    %147 = vdwg.mxu0
    %v148 = vmax.f32 %v145, 0.0
    %v149 = vadd.f32 %v46, %v148
    %v150 = vld [vmem:[#allocation2] sm:$0xff]
    %v151 = vld [vmem:[#allocation2 + $0x8] sm:$0xff]
    %v152 = vld [vmem:[#allocation2 + $0x10] sm:$0xff]
    %v153 = vld [vmem:[#allocation2 + $0x18] sm:$0xff]
    %v154 = vld [vmem:[#allocation2 + $0x20] sm:$0xff]
    %v155 = vld [vmem:[#allocation2 + $0x28] sm:$0xff]
    %v156 = vld [vmem:[#allocation2 + $0x30] sm:$0xff]
    %v157 = vld [vmem:[#allocation2 + $0x38] sm:$0xff]
    %v158 = vld [vmem:[#allocation2 + $0x40] sm:$0xff]
    %v159 = vld [vmem:[#allocation2 + $0x48] sm:$0xff]
    %v160 = vld [vmem:[#allocation2 + $0x50] sm:$0xff]
    %v161 = vld [vmem:[#allocation2 + $0x58] sm:$0xff]
    %v162 = vld [vmem:[#allocation2 + $0x60] sm:$0xff]
    %v163 = vld [vmem:[#allocation2 + $0x68] sm:$0xff]
    %v164 = vld [vmem:[#allocation2 + $0x70] sm:$0xff]
    %v165 = vld [vmem:[#allocation2 + $0x78] sm:$0xff]
    %166 = vmatprep.subr.mxu0 0.0
    %167 = vmatpush1.msra.mxu0 %v150
    %168 = vmatprep.subr.mxu0 0.0
    %169 = vmatpush1.msra.mxu0 %v151
    %170 = vmatprep.subr.mxu0 0.0
    %171 = vmatpush1.msra.mxu0 %v152
    %172 = vmatprep.subr.mxu0 0.0
    %173 = vmatpush1.msra.mxu0 %v153
    %174 = vmatprep.subr.mxu0 0.0
    %175 = vmatpush1.msra.mxu0 %v154
    %176 = vmatprep.subr.mxu0 0.0
    %177 = vmatpush1.msra.mxu0 %v155
    %178 = vmatprep.subr.mxu0 0.0
    %179 = vmatpush1.msra.mxu0 %v156
    %180 = vmatprep.subr.mxu0 0.0
    %181 = vmatpush1.msra.mxu0 %v157
    %182 = vmatprep.subr.mxu0 0.0
    %183 = vmatpush1.msra.mxu0 %v158
    %184 = vmatprep.subr.mxu0 0.0
    %185 = vmatpush1.msra.mxu0 %v159
    %186 = vmatprep.subr.mxu0 0.0
    %187 = vmatpush1.msra.mxu0 %v160
    %188 = vmatprep.subr.mxu0 0.0
    %189 = vmatpush1.msra.mxu0 %v161
    %190 = vmatprep.subr.mxu0 0.0
    %191 = vmatpush1.msra.mxu0 %v162
    %192 = vmatprep.subr.mxu0 0.0
    %193 = vmatpush1.msra.mxu0 %v163
    %194 = vmatprep.subr.mxu0 0.0
    %195 = vmatpush1.msra.mxu0 %v164
    %196 = vmatprep.subr.mxu0 0.0
    %197 = vmatpush1.msra.mxu0 %v165
    %198 = vmatprep.subr.mxu0 0.0
    %199 = vmatpush1.msra.mxu0 0.0
    %200 = vmatprep.subr.mxu0 0.0
    %201 = vmatpush1.msra.mxu0 0.0
    %202 = vmatprep.subr.mxu0 0.0
    %203 = vmatpush1.msra.mxu0 0.0
    %204 = vmatprep.subr.mxu0 0.0
    %205 = vmatpush1.msra.mxu0 0.0
    %206 = vmatprep.subr.mxu0 0.0
    %207 = vmatpush1.msra.mxu0 0.0
    %208 = vmatprep.subr.mxu0 0.0
    %209 = vmatpush1.msra.mxu0 0.0
    %210 = vmatprep.subr.mxu0 0.0
    %211 = vmatpush1.msra.mxu0 0.0
    %212 = vmatprep.subr.mxu0 0.0
    %213 = vmatpush1.msra.mxu0 0.0
    %214 = vmatprep.subr.mxu0 0.0
    %215 = vmatpush1.msra.mxu0 0.0
    %216 = vmatprep.subr.mxu0 0.0
    %217 = vmatpush1.msra.mxu0 0.0
    %218 = vmatprep.subr.mxu0 0.0
    %219 = vmatpush1.msra.mxu0 0.0
    %220 = vmatprep.subr.mxu0 0.0
    %221 = vmatpush1.msra.mxu0 0.0
    %222 = vmatprep.subr.mxu0 0.0
    %223 = vmatpush1.msra.mxu0 0.0
    %224 = vmatprep.subr.mxu0 0.0
    %225 = vmatpush1.msra.mxu0 0.0
    %226 = vmatprep.subr.mxu0 0.0
    %227 = vmatpush1.msra.mxu0 0.0
    %228 = vmatprep.subr.mxu0 0.0
    %229 = vmatpush1.msra.mxu0 0.0
    %230 = vmatprep.mubr.f32.mxu0 0.0
    %231 = vmatmul.mubr.f32.gmra.mrb[0].mxu0 %v149
    %v232 = vpop.f32.mrb[0].mxu0
    %v233 = vadd.f32 0.0, %v232
    %v234 = vpop.f32.mrb[0].mxu0
    %235 = vdwg.mxu0
    %v236 = vld [vmem:[%s4] sm:$0xf]
    %vm237 = vcmask 31744
    %v239 = vsel %vm237, %v233, 0
    %vm241 = vcmask 1043456
    %v243 = vsel %vm241, %v236, 0
    %245 = vmatprep.subr.mxu0 0.0
    %246 = vmatpush1.msra.mxu0 %v243
    %247 = vmatprep.subr.mxu0 0.0
    %248 = vmatpush1.msra.mxu0 0.0
    %249 = vmatprep.subr.mxu0 0.0
    %250 = vmatpush1.msra.mxu0 0.0
    %251 = vmatprep.subr.mxu0 0.0
    %252 = vmatpush1.msra.mxu0 0.0
    %253 = vmatprep.subr.mxu0 0.0
    %254 = vmatpush1.msra.mxu0 0.0
    %255 = vmatprep.subr.mxu0 0.0
    %256 = vmatpush1.msra.mxu0 0.0
    %257 = vmatprep.subr.mxu0 0.0
    %258 = vmatpush1.msra.mxu0 0.0
    %259 = vmatprep.subr.mxu0 0.0
    %260 = vmatpush1.msra.mxu0 0.0
    %261 = vmatprep.subr.mxu0 0.0
    %262 = vmatpush1.msra.mxu0 0.0
    %263 = vmatprep.subr.mxu0 0.0
    %264 = vmatpush1.msra.mxu0 0.0
    %265 = vmatprep.subr.mxu0 0.0
    %266 = vmatpush1.msra.mxu0 0.0
    %267 = vmatprep.subr.mxu0 0.0
    %268 = vmatpush1.msra.mxu0 0.0
    %269 = vmatprep.subr.mxu0 0.0
    %270 = vmatpush1.msra.mxu0 0.0
    %271 = vmatprep.subr.mxu0 0.0
    %272 = vmatpush1.msra.mxu0 0.0
    %273 = vmatprep.subr.mxu0 0.0
    %274 = vmatpush1.msra.mxu0 0.0
    %275 = vmatprep.subr.mxu0 0.0
    %276 = vmatpush1.msra.mxu0 0.0
    %277 = vmatprep.subr.mxu0 0.0
    %278 = vmatpush1.msra.mxu0 0.0
    %279 = vmatprep.subr.mxu0 0.0
    %280 = vmatpush1.msra.mxu0 0.0
    %281 = vmatprep.subr.mxu0 0.0
    %282 = vmatpush1.msra.mxu0 0.0
    %283 = vmatprep.subr.mxu0 0.0
    %284 = vmatpush1.msra.mxu0 0.0
    %285 = vmatprep.subr.mxu0 0.0
    %286 = vmatpush1.msra.mxu0 0.0
    %287 = vmatprep.subr.mxu0 0.0
    %288 = vmatpush1.msra.mxu0 0.0
    %289 = vmatprep.subr.mxu0 0.0
    %290 = vmatpush1.msra.mxu0 0.0
    %291 = vmatprep.subr.mxu0 0.0
    %292 = vmatpush1.msra.mxu0 0.0
    %293 = vmatprep.subr.mxu0 0.0
    %294 = vmatpush1.msra.mxu0 0.0
    %295 = vmatprep.subr.mxu0 0.0
    %296 = vmatpush1.msra.mxu0 0.0
    %297 = vmatprep.subr.mxu0 0.0
    %298 = vmatpush1.msra.mxu0 0.0
    %299 = vmatprep.subr.mxu0 0.0
    %300 = vmatpush1.msra.mxu0 0.0
    %301 = vmatprep.subr.mxu0 0.0
    %302 = vmatpush1.msra.mxu0 0.0
    %303 = vmatprep.subr.mxu0 0.0
    %304 = vmatpush1.msra.mxu0 0.0
    %305 = vmatprep.subr.mxu0 0.0
    %306 = vmatpush1.msra.mxu0 0.0
    %307 = vmatprep.subr.mxu0 0.0
    %308 = vmatpush1.msra.mxu0 0.0
    %309 = vmatprep.mubr.f32.mxu0 0.0
    %310 = vmatmul.mubr.f32.gmra.mrb[0].mxu0 %v239
    %v311 = vpop.f32.mrb[0].mxu0
    %v312 = vadd.f32 0.0, %v311
    %v313 = vpop.f32.mrb[0].mxu0
    %314 = vdwg.mxu0
    %v315 = vsub.f32 %v149, %v312
    %v316 = vmul.f32 %v315, %v315
    %317 = vmatprep.subr.mxu0 0.0
    %318 = vmatpush1.msra.mxu0 %v150
    %319 = vmatprep.subr.mxu0 0.0
    %320 = vmatpush1.msra.mxu0 %v151
    %321 = vmatprep.subr.mxu0 0.0
    %322 = vmatpush1.msra.mxu0 %v152
    %323 = vmatprep.subr.mxu0 0.0
    %324 = vmatpush1.msra.mxu0 %v153
    %325 = vmatprep.subr.mxu0 0.0
    %326 = vmatpush1.msra.mxu0 %v154
    %327 = vmatprep.subr.mxu0 0.0
    %328 = vmatpush1.msra.mxu0 %v155
    %329 = vmatprep.subr.mxu0 0.0
    %330 = vmatpush1.msra.mxu0 %v156
    %331 = vmatprep.subr.mxu0 0.0
    %332 = vmatpush1.msra.mxu0 %v157
    %333 = vmatprep.subr.mxu0 0.0
    %334 = vmatpush1.msra.mxu0 %v158
    %335 = vmatprep.subr.mxu0 0.0
    %336 = vmatpush1.msra.mxu0 %v159
    %337 = vmatprep.subr.mxu0 0.0
    %338 = vmatpush1.msra.mxu0 %v160
    %339 = vmatprep.subr.mxu0 0.0
    %340 = vmatpush1.msra.mxu0 %v161
    %341 = vmatprep.subr.mxu0 0.0
    %342 = vmatpush1.msra.mxu0 %v162
    %343 = vmatprep.subr.mxu0 0.0
    %344 = vmatpush1.msra.mxu0 %v163
    %345 = vmatprep.subr.mxu0 0.0
    %346 = vmatpush1.msra.mxu0 %v164
    %347 = vmatprep.subr.mxu0 0.0
    %348 = vmatpush1.msra.mxu0 %v165
    %349 = vmatprep.subr.mxu0 0.0
    %350 = vmatpush1.msra.mxu0 0.0
    %351 = vmatprep.subr.mxu0 0.0
    %352 = vmatpush1.msra.mxu0 0.0
    %353 = vmatprep.subr.mxu0 0.0
    %354 = vmatpush1.msra.mxu0 0.0
    %355 = vmatprep.subr.mxu0 0.0
    %356 = vmatpush1.msra.mxu0 0.0
    %357 = vmatprep.subr.mxu0 0.0
    %358 = vmatpush1.msra.mxu0 0.0
    %359 = vmatprep.subr.mxu0 0.0
    %360 = vmatpush1.msra.mxu0 0.0
    %361 = vmatprep.subr.mxu0 0.0
    %362 = vmatpush1.msra.mxu0 0.0
    %363 = vmatprep.subr.mxu0 0.0
    %364 = vmatpush1.msra.mxu0 0.0
    %365 = vmatprep.subr.mxu0 0.0
    %366 = vmatpush1.msra.mxu0 0.0
    %367 = vmatprep.subr.mxu0 0.0
    %368 = vmatpush1.msra.mxu0 0.0
    %369 = vmatprep.subr.mxu0 0.0
    %370 = vmatpush1.msra.mxu0 0.0
    %371 = vmatprep.subr.mxu0 0.0
    %372 = vmatpush1.msra.mxu0 0.0
    %373 = vmatprep.subr.mxu0 0.0
    %374 = vmatpush1.msra.mxu0 0.0
    %375 = vmatprep.subr.mxu0 0.0
    %376 = vmatpush1.msra.mxu0 0.0
    %377 = vmatprep.subr.mxu0 0.0
    %378 = vmatpush1.msra.mxu0 0.0
    %379 = vmatprep.subr.mxu0 0.0
    %380 = vmatpush1.msra.mxu0 0.0
    %381 = vmatprep.mubr.f32.mxu0 0.0
    %382 = vmatmul.mubr.f32.gmra.mrb[0].mxu0 %v316
    %v383 = vpop.f32.mrb[0].mxu0
    %v384 = vadd.f32 0.0, %v383
    %v385 = vpop.f32.mrb[0].mxu0
    %386 = vdwg.mxu0
    %v388 = vsel %vm237, %v384, 0
    %390 = vmatprep.subr.mxu0 0.0
    %391 = vmatpush1.msra.mxu0 %v243
    %392 = vmatprep.subr.mxu0 0.0
    %393 = vmatpush1.msra.mxu0 0.0
    %394 = vmatprep.subr.mxu0 0.0
    %395 = vmatpush1.msra.mxu0 0.0
    %396 = vmatprep.subr.mxu0 0.0
    %397 = vmatpush1.msra.mxu0 0.0
    %398 = vmatprep.subr.mxu0 0.0
    %399 = vmatpush1.msra.mxu0 0.0
    %400 = vmatprep.subr.mxu0 0.0
    %401 = vmatpush1.msra.mxu0 0.0
    %402 = vmatprep.subr.mxu0 0.0
    %403 = vmatpush1.msra.mxu0 0.0
    %404 = vmatprep.subr.mxu0 0.0
    %405 = vmatpush1.msra.mxu0 0.0
    %406 = vmatprep.subr.mxu0 0.0
    %407 = vmatpush1.msra.mxu0 0.0
    %408 = vmatprep.subr.mxu0 0.0
    %409 = vmatpush1.msra.mxu0 0.0
    %410 = vmatprep.subr.mxu0 0.0
    %411 = vmatpush1.msra.mxu0 0.0
    %412 = vmatprep.subr.mxu0 0.0
    %413 = vmatpush1.msra.mxu0 0.0
    %414 = vmatprep.subr.mxu0 0.0
    %415 = vmatpush1.msra.mxu0 0.0
    %416 = vmatprep.subr.mxu0 0.0
    %417 = vmatpush1.msra.mxu0 0.0
    %418 = vmatprep.subr.mxu0 0.0
    %419 = vmatpush1.msra.mxu0 0.0
    %420 = vmatprep.subr.mxu0 0.0
    %421 = vmatpush1.msra.mxu0 0.0
    %422 = vmatprep.subr.mxu0 0.0
    %423 = vmatpush1.msra.mxu0 0.0
    %424 = vmatprep.subr.mxu0 0.0
    %425 = vmatpush1.msra.mxu0 0.0
    %426 = vmatprep.subr.mxu0 0.0
    %427 = vmatpush1.msra.mxu0 0.0
    %428 = vmatprep.subr.mxu0 0.0
    %429 = vmatpush1.msra.mxu0 0.0
    %430 = vmatprep.subr.mxu0 0.0
    %431 = vmatpush1.msra.mxu0 0.0
    %432 = vmatprep.subr.mxu0 0.0
    %433 = vmatpush1.msra.mxu0 0.0
    %434 = vmatprep.subr.mxu0 0.0
    %435 = vmatpush1.msra.mxu0 0.0
    %436 = vmatprep.subr.mxu0 0.0
    %437 = vmatpush1.msra.mxu0 0.0
    %438 = vmatprep.subr.mxu0 0.0
    %439 = vmatpush1.msra.mxu0 0.0
    %440 = vmatprep.subr.mxu0 0.0
    %441 = vmatpush1.msra.mxu0 0.0
    %442 = vmatprep.subr.mxu0 0.0
    %443 = vmatpush1.msra.mxu0 0.0
    %444 = vmatprep.subr.mxu0 0.0
    %445 = vmatpush1.msra.mxu0 0.0
    %446 = vmatprep.subr.mxu0 0.0
    %447 = vmatpush1.msra.mxu0 0.0
    %448 = vmatprep.subr.mxu0 0.0
    %449 = vmatpush1.msra.mxu0 0.0
    %450 = vmatprep.subr.mxu0 0.0
    %451 = vmatpush1.msra.mxu0 0.0
    %452 = vmatprep.subr.mxu0 0.0
    %453 = vmatpush1.msra.mxu0 0.0
    %454 = vmatprep.mubr.f32.mxu0 0.0
    %455 = vmatmul.mubr.f32.gmra.mrb[0].mxu0 %v388
    %v456 = vpop.f32.mrb[0].mxu0
    %v457 = vadd.f32 1e-05, %v456
    %v458 = vpop.f32.mrb[0].mxu0
    %459 = vdwg.mxu0
    %v460 = vrsqrt.pop %v457
    %v461 = vmul.f32 %v315, %v460
    %v462 = vld [vmem:[%s5] sm:$0x1]
    %v464 = vlaneseq
    %v465 = vshrl.u32 %v464, 7
    %v466 = vsub.s32 0, %v465
    %v467 = vrot.slane %v462, %v466
    %v469 = vmul.f32 %v461, %v467
    %v470 = vld [vmem:[%s6] sm:$0x1]
    %v472 = vlaneseq
    %v473 = vshrl.u32 %v472, 7
    %v474 = vsub.s32 0, %v473
    %v475 = vrot.slane %v470, %v474
    %v477 = vadd.f32 %v469, %v475
    %478 = vst [vmem:[%s9] sm:$0xff] %v477
    // Predicated region
    $region42: #{apply_jit.1} parent=1 // pred_check
      _
    $region43: #{apply_jit.1} parent=1 // pred_check_branch
      %480 = sbr.rel (0) target = $region45
    $region44: #{apply_jit.1} parent=1 // pred_region
      _
    $region45: #{apply_jit.1} parent=1 // pred_fallthru
      _
    // Predicated region
    $region46: #{apply_jit.1} parent=1 // pred_check
      _
    $region47: #{apply_jit.1} parent=1 // pred_check_branch
      %482 = sbr.rel (0) target = $region49
    $region48: #{apply_jit.1} parent=1 // pred_region
      _
    $region49: #{apply_jit.1} parent=1 // pred_fallthru
      _
    %483 = vsyncpa [#allocation3], 1

// kernel: apply_jit.1
$region0: #{apply_jit.1}
  #allocation0 [shape = 'u32[]', space=smem, size = 0x4, offset = 0x4, fixed_abs, tag = 'smem constant byte address 0x4 - core index']
  #allocation1 [shape = 'u32[144,128]{1,0:T(1,128)}', space=vmem, size = 0x12000, scoped, tag = 'internal scratch']
  %s0 = inlined_call_operand.vmem [shape: f32[1,8,128], index: 0, kind: input, shape index: {}]
  %s1 = inlined_call_operand.vmem [shape: f32[8,24], index: 1, kind: input, shape index: {}]
  %s2 = inlined_call_operand.vmem [shape: f32[8,1], index: 2, kind: input, shape index: {}]
  %s3 = inlined_call_operand.hbm [shape: f32[128,4], index: 3, kind: input, shape index: {}]
  %s4 = inlined_call_operand.vmem [shape: f32[4,128], index: 4, kind: input, shape index: {}]
  %s5 = inlined_call_operand.vmem [shape: f32[1,128], index: 5, kind: input, shape index: {}]
  %s6 = inlined_call_operand.vmem [shape: f32[1,128], index: 6, kind: input, shape index: {}]
  %s7 = inlined_call_operand.vmem [shape: f32[1,128], index: 7, kind: input, shape index: {}]
  %s8 = inlined_call_operand.vmem [shape: f32[1,128], index: 8, kind: input, shape index: {}]
  %s9 = inlined_call_operand.vmem [shape: f32[1,8,128], index: 9, kind: output, shape index: {}]
  %s10 = sld [smem:[#allocation0]]
  $region50: #{apply_jit.1} parent=0
    _
  %s12 = ssub.s32 1, %s10
  %s13 = scalar_select 0, %s12, %s10
  $region1: #{apply_jit.1} parent=0
    #allocation2 [shape = 'u8[65536]{0}', space=vmem, size = 0x10000, scoped, tag = 'input window, operand 3, single buffered']
    #allocation3 [shape = 's32[1]{0}', space=sflag, size = 0x4, scoped, tag = 'scoped memory for apply_jit.1']
    %14 = vsyncpa [#allocation3], 0
    // Predicated region
    $region2: #{apply_jit.1} parent=1 // pred_check
      _
    $region3: #{apply_jit.1} parent=1 // pred_check_branch
      %16 = sbr.rel (0) target = $region5
    $region4: #{apply_jit.1} parent=1 // pred_region
      _
    $region5: #{apply_jit.1} parent=1 // pred_fallthru
      _
    // Predicated region
    $region6: #{apply_jit.1} parent=1 // pred_check
      _
    $region7: #{apply_jit.1} parent=1 // pred_check_branch
      %18 = sbr.rel (0) target = $region9
    $region8: #{apply_jit.1} parent=1 // pred_region
      _
    $region9: #{apply_jit.1} parent=1 // pred_fallthru
      _
    // Predicated region
    $region10: #{apply_jit.1} parent=1 // pred_check
      _
    $region11: #{apply_jit.1} parent=1 // pred_check_branch
      %20 = sbr.rel (0) target = $region13
    $region12: #{apply_jit.1} parent=1 // pred_region
      _
    $region13: #{apply_jit.1} parent=1 // pred_fallthru
      _
    // Predicated region
    $region14: #{apply_jit.1} parent=1 // pred_check
      _
    $region15: #{apply_jit.1} parent=1 // pred_check_branch
      %22 = sbr.rel (0) target = $region17
    $region16: #{apply_jit.1} parent=1 // pred_region
      %s24 = ssub.s32 2048, 2048
      %25 = vsyncadd [#allocation3], %s24
      %s26 = sshll.u32 [#allocation2], 4
      %s27 = int_to_ptr.vmem [resolvable:$true] %s26
      %32 = dma.hbm_to_vmem [thread:$0]  %s3, 2048, %s27, [#allocation3], 128, 128, 8
    $region17: #{apply_jit.1} parent=1 // pred_fallthru
      _
    // Predicated region
    $region18: #{apply_jit.1} parent=1 // pred_check
      _
    $region19: #{apply_jit.1} parent=1 // pred_check_branch
      %34 = sbr.rel (0) target = $region21
    $region20: #{apply_jit.1} parent=1 // pred_region
      _
    $region21: #{apply_jit.1} parent=1 // pred_fallthru
      _
    // Predicated region
    $region22: #{apply_jit.1} parent=1 // pred_check
      _
    $region23: #{apply_jit.1} parent=1 // pred_check_branch
      %36 = sbr.rel (0) target = $region25
    $region24: #{apply_jit.1} parent=1 // pred_region
      _
    $region25: #{apply_jit.1} parent=1 // pred_fallthru
      _
    // Predicated region
    $region26: #{apply_jit.1} parent=1 // pred_check
      _
    $region27: #{apply_jit.1} parent=1 // pred_check_branch
      %38 = sbr.rel (0) target = $region29
    $region28: #{apply_jit.1} parent=1 // pred_region
      _
    $region29: #{apply_jit.1} parent=1 // pred_fallthru
      _
    // Predicated region
    $region30: #{apply_jit.1} parent=1 // pred_check
      _
    $region31: #{apply_jit.1} parent=1 // pred_check_branch
      %40 = sbr.rel (0) target = $region33
    $region32: #{apply_jit.1} parent=1 // pred_region
      _
    $region33: #{apply_jit.1} parent=1 // pred_fallthru
      _
    // Predicated region
    $region34: #{apply_jit.1} parent=1 // pred_check
      _
    $region35: #{apply_jit.1} parent=1 // pred_check_branch
      %42 = sbr.rel (0) target = $region37
    $region36: #{apply_jit.1} parent=1 // pred_region
      _
    $region37: #{apply_jit.1} parent=1 // pred_fallthru
      _
    // Predicated region
    $region38: #{apply_jit.1} parent=1 // pred_check
      _
    $region39: #{apply_jit.1} parent=1 // pred_check_branch
      %44 = sbr.rel (0) target = $region41
    $region40: #{apply_jit.1} parent=1 // pred_region
      %45 = dma.done [#allocation3], 2048
    $region41: #{apply_jit.1} parent=1 // pred_fallthru
      _
    %v46 = vld [vmem:[%s0] sm:$0xff]
    %47 = vrot.lane.b32.xlu0 %v46, 1
    %v48 = vpop.permute.xlu0 %47
    %v49 = vld [vmem:[%s7] sm:$0x1]
    %v51 = vlaneseq
    %v52 = vshrl.u32 %v51, 7
    %v53 = vsub.s32 0, %v52
    %v54 = vrot.slane %v49, %v53
    %v56 = vmul.f32 %v48, %v54
    %57 = vrot.lane.b32.xlu0 %v46, 127
    %v58 = vpop.permute.xlu0 %57
    %v59 = vld [vmem:[%s8] sm:$0x1]
    %v61 = vlaneseq
    %v62 = vshrl.u32 %v61, 7
    %v63 = vsub.s32 0, %v62
    %v64 = vrot.slane %v59, %v63
    %v66 = vmul.f32 %v58, %v64
    %v67 = vld [vmem:[%s1] sm:$0xff]
    %v68 = vld [vmem:[%s2] sm:$0xff]
    %70 = vset.pattern.permute.xlu0 0
    %71 = vperm.xlu0 %70, %v68
    %v72 = vpop.permute.xlu0 %71
    %vm74 = vcmask 195584
    %v76 = vsel %vm74, %v67, 0
    %78 = vmatprep.subr.mxu0 0.0
    %79 = vmatpush1.msra.mxu0 %v56
    %80 = vmatprep.subr.mxu0 0.0
    %81 = vmatpush1.msra.mxu0 %v46
    %82 = vmatprep.subr.mxu0 0.0
    %83 = vmatpush1.msra.mxu0 %v66
    %84 = vmatprep.subr.mxu0 0.0
    %85 = vmatpush1.msra.mxu0 0.0
    %86 = vmatprep.subr.mxu0 0.0
    %87 = vmatpush1.msra.mxu0 0.0
    %88 = vmatprep.subr.mxu0 0.0
    %89 = vmatpush1.msra.mxu0 0.0
    %90 = vmatprep.subr.mxu0 0.0
    %91 = vmatpush1.msra.mxu0 0.0
    %92 = vmatprep.subr.mxu0 0.0
    %93 = vmatpush1.msra.mxu0 0.0
    %94 = vmatprep.subr.mxu0 0.0
    %95 = vmatpush1.msra.mxu0 0.0
    %96 = vmatprep.subr.mxu0 0.0
    %97 = vmatpush1.msra.mxu0 0.0
    %98 = vmatprep.subr.mxu0 0.0
    %99 = vmatpush1.msra.mxu0 0.0
    %100 = vmatprep.subr.mxu0 0.0
    %101 = vmatpush1.msra.mxu0 0.0
    %102 = vmatprep.subr.mxu0 0.0
    %103 = vmatpush1.msra.mxu0 0.0
    %104 = vmatprep.subr.mxu0 0.0
    %105 = vmatpush1.msra.mxu0 0.0
    %106 = vmatprep.subr.mxu0 0.0
    %107 = vmatpush1.msra.mxu0 0.0
    %108 = vmatprep.subr.mxu0 0.0
    %109 = vmatpush1.msra.mxu0 0.0
    %110 = vmatprep.subr.mxu0 0.0
    %111 = vmatpush1.msra.mxu0 0.0
    %112 = vmatprep.subr.mxu0 0.0
    %113 = vmatpush1.msra.mxu0 0.0
    %114 = vmatprep.subr.mxu0 0.0
    %115 = vmatpush1.msra.mxu0 0.0
    %116 = vmatprep.subr.mxu0 0.0
    %117 = vmatpush1.msra.mxu0 0.0
    %118 = vmatprep.subr.mxu0 0.0
    %119 = vmatpush1.msra.mxu0 0.0
    %120 = vmatprep.subr.mxu0 0.0
    %121 = vmatpush1.msra.mxu0 0.0
    %122 = vmatprep.subr.mxu0 0.0
    %123 = vmatpush1.msra.mxu0 0.0
    %124 = vmatprep.subr.mxu0 0.0
    %125 = vmatpush1.msra.mxu0 0.0
    %126 = vmatprep.subr.mxu0 0.0
    %127 = vmatpush1.msra.mxu0 0.0
    %128 = vmatprep.subr.mxu0 0.0
    %129 = vmatpush1.msra.mxu0 0.0
    %130 = vmatprep.subr.mxu0 0.0
    %131 = vmatpush1.msra.mxu0 0.0
    %132 = vmatprep.subr.mxu0 0.0
    %133 = vmatpush1.msra.mxu0 0.0
    %134 = vmatprep.subr.mxu0 0.0
    %135 = vmatpush1.msra.mxu0 0.0
    %136 = vmatprep.subr.mxu0 0.0
    %137 = vmatpush1.msra.mxu0 0.0
    %138 = vmatprep.subr.mxu0 0.0
    %139 = vmatpush1.msra.mxu0 0.0
    %140 = vmatprep.subr.mxu0 0.0
    %141 = vmatpush1.msra.mxu0 0.0
    %142 = vmatprep.mubr.f32.mxu0 0.0
    %143 = vmatmul.mubr.f32.gmra.mrb[0].mxu0 %v76
    %v144 = vpop.f32.mrb[0].mxu0
    %v145 = vadd.f32 %v72, %v144
    %v146 = vpop.f32.mrb[0].mxu0
    %147 = vdwg.mxu0
    %v148 = vmax.f32 %v145, 0.0
    %v149 = vadd.f32 %v46, %v148
    %v150 = vld [vmem:[#allocation2] sm:$0xff]
    %v151 = vld [vmem:[#allocation2 + $0x8] sm:$0xff]
    %v152 = vld [vmem:[#allocation2 + $0x10] sm:$0xff]
    %v153 = vld [vmem:[#allocation2 + $0x18] sm:$0xff]
    %v154 = vld [vmem:[#allocation2 + $0x20] sm:$0xff]
    %v155 = vld [vmem:[#allocation2 + $0x28] sm:$0xff]
    %v156 = vld [vmem:[#allocation2 + $0x30] sm:$0xff]
    %v157 = vld [vmem:[#allocation2 + $0x38] sm:$0xff]
    %v158 = vld [vmem:[#allocation2 + $0x40] sm:$0xff]
    %v159 = vld [vmem:[#allocation2 + $0x48] sm:$0xff]
    %v160 = vld [vmem:[#allocation2 + $0x50] sm:$0xff]
    %v161 = vld [vmem:[#allocation2 + $0x58] sm:$0xff]
    %v162 = vld [vmem:[#allocation2 + $0x60] sm:$0xff]
    %v163 = vld [vmem:[#allocation2 + $0x68] sm:$0xff]
    %v164 = vld [vmem:[#allocation2 + $0x70] sm:$0xff]
    %v165 = vld [vmem:[#allocation2 + $0x78] sm:$0xff]
    %166 = vmatprep.subr.mxu0 0.0
    %167 = vmatpush1.msra.mxu0 %v150
    %168 = vmatprep.subr.mxu0 0.0
    %169 = vmatpush1.msra.mxu0 %v151
    %170 = vmatprep.subr.mxu0 0.0
    %171 = vmatpush1.msra.mxu0 %v152
    %172 = vmatprep.subr.mxu0 0.0
    %173 = vmatpush1.msra.mxu0 %v153
    %174 = vmatprep.subr.mxu0 0.0
    %175 = vmatpush1.msra.mxu0 %v154
    %176 = vmatprep.subr.mxu0 0.0
    %177 = vmatpush1.msra.mxu0 %v155
    %178 = vmatprep.subr.mxu0 0.0
    %179 = vmatpush1.msra.mxu0 %v156
    %180 = vmatprep.subr.mxu0 0.0
    %181 = vmatpush1.msra.mxu0 %v157
    %182 = vmatprep.subr.mxu0 0.0
    %183 = vmatpush1.msra.mxu0 %v158
    %184 = vmatprep.subr.mxu0 0.0
    %185 = vmatpush1.msra.mxu0 %v159
    %186 = vmatprep.subr.mxu0 0.0
    %187 = vmatpush1.msra.mxu0 %v160
    %188 = vmatprep.subr.mxu0 0.0
    %189 = vmatpush1.msra.mxu0 %v161
    %190 = vmatprep.subr.mxu0 0.0
    %191 = vmatpush1.msra.mxu0 %v162
    %192 = vmatprep.subr.mxu0 0.0
    %193 = vmatpush1.msra.mxu0 %v163
    %194 = vmatprep.subr.mxu0 0.0
    %195 = vmatpush1.msra.mxu0 %v164
    %196 = vmatprep.subr.mxu0 0.0
    %197 = vmatpush1.msra.mxu0 %v165
    %198 = vmatprep.subr.mxu0 0.0
    %199 = vmatpush1.msra.mxu0 0.0
    %200 = vmatprep.subr.mxu0 0.0
    %201 = vmatpush1.msra.mxu0 0.0
    %202 = vmatprep.subr.mxu0 0.0
    %203 = vmatpush1.msra.mxu0 0.0
    %204 = vmatprep.subr.mxu0 0.0
    %205 = vmatpush1.msra.mxu0 0.0
    %206 = vmatprep.subr.mxu0 0.0
    %207 = vmatpush1.msra.mxu0 0.0
    %208 = vmatprep.subr.mxu0 0.0
    %209 = vmatpush1.msra.mxu0 0.0
    %210 = vmatprep.subr.mxu0 0.0
    %211 = vmatpush1.msra.mxu0 0.0
    %212 = vmatprep.subr.mxu0 0.0
    %213 = vmatpush1.msra.mxu0 0.0
    %214 = vmatprep.subr.mxu0 0.0
    %215 = vmatpush1.msra.mxu0 0.0
    %216 = vmatprep.subr.mxu0 0.0
    %217 = vmatpush1.msra.mxu0 0.0
    %218 = vmatprep.subr.mxu0 0.0
    %219 = vmatpush1.msra.mxu0 0.0
    %220 = vmatprep.subr.mxu0 0.0
    %221 = vmatpush1.msra.mxu0 0.0
    %222 = vmatprep.subr.mxu0 0.0
    %223 = vmatpush1.msra.mxu0 0.0
    %224 = vmatprep.subr.mxu0 0.0
    %225 = vmatpush1.msra.mxu0 0.0
    %226 = vmatprep.subr.mxu0 0.0
    %227 = vmatpush1.msra.mxu0 0.0
    %228 = vmatprep.subr.mxu0 0.0
    %229 = vmatpush1.msra.mxu0 0.0
    %230 = vmatprep.mubr.f32.mxu0 0.0
    %231 = vmatmul.mubr.f32.gmra.mrb[0].mxu0 %v149
    %v232 = vpop.f32.mrb[0].mxu0
    %v233 = vadd.f32 0.0, %v232
    %v234 = vpop.f32.mrb[0].mxu0
    %235 = vdwg.mxu0
    %v236 = vld [vmem:[%s4] sm:$0xf]
    %vm237 = vcmask 31744
    %v239 = vsel %vm237, %v233, 0
    %vm241 = vcmask 1043456
    %v243 = vsel %vm241, %v236, 0
    %245 = vmatprep.subr.mxu0 0.0
    %246 = vmatpush1.msra.mxu0 %v243
    %247 = vmatprep.subr.mxu0 0.0
    %248 = vmatpush1.msra.mxu0 0.0
    %249 = vmatprep.subr.mxu0 0.0
    %250 = vmatpush1.msra.mxu0 0.0
    %251 = vmatprep.subr.mxu0 0.0
    %252 = vmatpush1.msra.mxu0 0.0
    %253 = vmatprep.subr.mxu0 0.0
    %254 = vmatpush1.msra.mxu0 0.0
    %255 = vmatprep.subr.mxu0 0.0
    %256 = vmatpush1.msra.mxu0 0.0
    %257 = vmatprep.subr.mxu0 0.0
    %258 = vmatpush1.msra.mxu0 0.0
    %259 = vmatprep.subr.mxu0 0.0
    %260 = vmatpush1.msra.mxu0 0.0
    %261 = vmatprep.subr.mxu0 0.0
    %262 = vmatpush1.msra.mxu0 0.0
    %263 = vmatprep.subr.mxu0 0.0
    %264 = vmatpush1.msra.mxu0 0.0
    %265 = vmatprep.subr.mxu0 0.0
    %266 = vmatpush1.msra.mxu0 0.0
    %267 = vmatprep.subr.mxu0 0.0
    %268 = vmatpush1.msra.mxu0 0.0
    %269 = vmatprep.subr.mxu0 0.0
    %270 = vmatpush1.msra.mxu0 0.0
    %271 = vmatprep.subr.mxu0 0.0
    %272 = vmatpush1.msra.mxu0 0.0
    %273 = vmatprep.subr.mxu0 0.0
    %274 = vmatpush1.msra.mxu0 0.0
    %275 = vmatprep.subr.mxu0 0.0
    %276 = vmatpush1.msra.mxu0 0.0
    %277 = vmatprep.subr.mxu0 0.0
    %278 = vmatpush1.msra.mxu0 0.0
    %279 = vmatprep.subr.mxu0 0.0
    %280 = vmatpush1.msra.mxu0 0.0
    %281 = vmatprep.subr.mxu0 0.0
    %282 = vmatpush1.msra.mxu0 0.0
    %283 = vmatprep.subr.mxu0 0.0
    %284 = vmatpush1.msra.mxu0 0.0
    %285 = vmatprep.subr.mxu0 0.0
    %286 = vmatpush1.msra.mxu0 0.0
    %287 = vmatprep.subr.mxu0 0.0
    %288 = vmatpush1.msra.mxu0 0.0
    %289 = vmatprep.subr.mxu0 0.0
    %290 = vmatpush1.msra.mxu0 0.0
    %291 = vmatprep.subr.mxu0 0.0
    %292 = vmatpush1.msra.mxu0 0.0
    %293 = vmatprep.subr.mxu0 0.0
    %294 = vmatpush1.msra.mxu0 0.0
    %295 = vmatprep.subr.mxu0 0.0
    %296 = vmatpush1.msra.mxu0 0.0
    %297 = vmatprep.subr.mxu0 0.0
    %298 = vmatpush1.msra.mxu0 0.0
    %299 = vmatprep.subr.mxu0 0.0
    %300 = vmatpush1.msra.mxu0 0.0
    %301 = vmatprep.subr.mxu0 0.0
    %302 = vmatpush1.msra.mxu0 0.0
    %303 = vmatprep.subr.mxu0 0.0
    %304 = vmatpush1.msra.mxu0 0.0
    %305 = vmatprep.subr.mxu0 0.0
    %306 = vmatpush1.msra.mxu0 0.0
    %307 = vmatprep.subr.mxu0 0.0
    %308 = vmatpush1.msra.mxu0 0.0
    %309 = vmatprep.mubr.f32.mxu0 0.0
    %310 = vmatmul.mubr.f32.gmra.mrb[0].mxu0 %v239
    %v311 = vpop.f32.mrb[0].mxu0
    %v312 = vadd.f32 0.0, %v311
    %v313 = vpop.f32.mrb[0].mxu0
    %314 = vdwg.mxu0
    %v315 = vsub.f32 %v149, %v312
    %v316 = vmul.f32 %v315, %v315
    %317 = vmatprep.subr.mxu0 0.0
    %318 = vmatpush1.msra.mxu0 %v150
    %319 = vmatprep.subr.mxu0 0.0
    %320 = vmatpush1.msra.mxu0 %v151
    %321 = vmatprep.subr.mxu0 0.0
    %322 = vmatpush1.msra.mxu0 %v152
    %323 = vmatprep.subr.mxu0 0.0
    %324 = vmatpush1.msra.mxu0 %v153
    %325 = vmatprep.subr.mxu0 0.0
    %326 = vmatpush1.msra.mxu0 %v154
    %327 = vmatprep.subr.mxu0 0.0
    %328 = vmatpush1.msra.mxu0 %v155
    %329 = vmatprep.subr.mxu0 0.0
    %330 = vmatpush1.msra.mxu0 %v156
    %331 = vmatprep.subr.mxu0 0.0
    %332 = vmatpush1.msra.mxu0 %v157
    %333 = vmatprep.subr.mxu0 0.0
    %334 = vmatpush1.msra.mxu0 %v158
    %335 = vmatprep.subr.mxu0 0.0
    %336 = vmatpush1.msra.mxu0 %v159
    %337 = vmatprep.subr.mxu0 0.0
    %338 = vmatpush1.msra.mxu0 %v160
    %339 = vmatprep.subr.mxu0 0.0
    %340 = vmatpush1.msra.mxu0 %v161
    %341 = vmatprep.subr.mxu0 0.0
    %342 = vmatpush1.msra.mxu0 %v162
    %343 = vmatprep.subr.mxu0 0.0
    %344 = vmatpush1.msra.mxu0 %v163
    %345 = vmatprep.subr.mxu0 0.0
    %346 = vmatpush1.msra.mxu0 %v164
    %347 = vmatprep.subr.mxu0 0.0
    %348 = vmatpush1.msra.mxu0 %v165
    %349 = vmatprep.subr.mxu0 0.0
    %350 = vmatpush1.msra.mxu0 0.0
    %351 = vmatprep.subr.mxu0 0.0
    %352 = vmatpush1.msra.mxu0 0.0
    %353 = vmatprep.subr.mxu0 0.0
    %354 = vmatpush1.msra.mxu0 0.0
    %355 = vmatprep.subr.mxu0 0.0
    %356 = vmatpush1.msra.mxu0 0.0
    %357 = vmatprep.subr.mxu0 0.0
    %358 = vmatpush1.msra.mxu0 0.0
    %359 = vmatprep.subr.mxu0 0.0
    %360 = vmatpush1.msra.mxu0 0.0
    %361 = vmatprep.subr.mxu0 0.0
    %362 = vmatpush1.msra.mxu0 0.0
    %363 = vmatprep.subr.mxu0 0.0
    %364 = vmatpush1.msra.mxu0 0.0
    %365 = vmatprep.subr.mxu0 0.0
    %366 = vmatpush1.msra.mxu0 0.0
    %367 = vmatprep.subr.mxu0 0.0
    %368 = vmatpush1.msra.mxu0 0.0
    %369 = vmatprep.subr.mxu0 0.0
    %370 = vmatpush1.msra.mxu0 0.0
    %371 = vmatprep.subr.mxu0 0.0
    %372 = vmatpush1.msra.mxu0 0.0
    %373 = vmatprep.subr.mxu0 0.0
    %374 = vmatpush1.msra.mxu0 0.0
    %375 = vmatprep.subr.mxu0 0.0
    %376 = vmatpush1.msra.mxu0 0.0
    %377 = vmatprep.subr.mxu0 0.0
    %378 = vmatpush1.msra.mxu0 0.0
    %379 = vmatprep.subr.mxu0 0.0
    %380 = vmatpush1.msra.mxu0 0.0
    %381 = vmatprep.mubr.f32.mxu0 0.0
    %382 = vmatmul.mubr.f32.gmra.mrb[0].mxu0 %v316
    %v383 = vpop.f32.mrb[0].mxu0
    %v384 = vadd.f32 0.0, %v383
    %v385 = vpop.f32.mrb[0].mxu0
    %386 = vdwg.mxu0
    %v388 = vsel %vm237, %v384, 0
    %390 = vmatprep.subr.mxu0 0.0
    %391 = vmatpush1.msra.mxu0 %v243
    %392 = vmatprep.subr.mxu0 0.0
    %393 = vmatpush1.msra.mxu0 0.0
    %394 = vmatprep.subr.mxu0 0.0
    %395 = vmatpush1.msra.mxu0 0.0
    %396 = vmatprep.subr.mxu0 0.0
    %397 = vmatpush1.msra.mxu0 0.0
    %398 = vmatprep.subr.mxu0 0.0
    %399 = vmatpush1.msra.mxu0 0.0
    %400 = vmatprep.subr.mxu0 0.0
    %401 = vmatpush1.msra.mxu0 0.0
    %402 = vmatprep.subr.mxu0 0.0
    %403 = vmatpush1.msra.mxu0 0.0
    %404 = vmatprep.subr.mxu0 0.0
    %405 = vmatpush1.msra.mxu0 0.0
    %406 = vmatprep.subr.mxu0 0.0
    %407 = vmatpush1.msra.mxu0 0.0
    %408 = vmatprep.subr.mxu0 0.0
    %409 = vmatpush1.msra.mxu0 0.0
    %410 = vmatprep.subr.mxu0 0.0
    %411 = vmatpush1.msra.mxu0 0.0
    %412 = vmatprep.subr.mxu0 0.0
    %413 = vmatpush1.msra.mxu0 0.0
    %414 = vmatprep.subr.mxu0 0.0
    %415 = vmatpush1.msra.mxu0 0.0
    %416 = vmatprep.subr.mxu0 0.0
    %417 = vmatpush1.msra.mxu0 0.0
    %418 = vmatprep.subr.mxu0 0.0
    %419 = vmatpush1.msra.mxu0 0.0
    %420 = vmatprep.subr.mxu0 0.0
    %421 = vmatpush1.msra.mxu0 0.0
    %422 = vmatprep.subr.mxu0 0.0
    %423 = vmatpush1.msra.mxu0 0.0
    %424 = vmatprep.subr.mxu0 0.0
    %425 = vmatpush1.msra.mxu0 0.0
    %426 = vmatprep.subr.mxu0 0.0
    %427 = vmatpush1.msra.mxu0 0.0
    %428 = vmatprep.subr.mxu0 0.0
    %429 = vmatpush1.msra.mxu0 0.0
    %430 = vmatprep.subr.mxu0 0.0
    %431 = vmatpush1.msra.mxu0 0.0
    %432 = vmatprep.subr.mxu0 0.0
    %433 = vmatpush1.msra.mxu0 0.0
    %434 = vmatprep.subr.mxu0 0.0
    %435 = vmatpush1.msra.mxu0 0.0
    %436 = vmatprep.subr.mxu0 0.0
    %437 = vmatpush1.msra.mxu0 0.0
    %438 = vmatprep.subr.mxu0 0.0
    %439 = vmatpush1.msra.mxu0 0.0
    %440 = vmatprep.subr.mxu0 0.0
    %441 = vmatpush1.msra.mxu0 0.0
    %442 = vmatprep.subr.mxu0 0.0
    %443 = vmatpush1.msra.mxu0 0.0
    %444 = vmatprep.subr.mxu0 0.0
    %445 = vmatpush1.msra.mxu0 0.0
    %446 = vmatprep.subr.mxu0 0.0
    %447 = vmatpush1.msra.mxu0 0.0
    %448 = vmatprep.subr.mxu0 0.0
    %449 = vmatpush1.msra.mxu0 0.0
    %450 = vmatprep.subr.mxu0 0.0
    %451 = vmatpush1.msra.mxu0 0.0
    %452 = vmatprep.subr.mxu0 0.0
    %453 = vmatpush1.msra.mxu0 0.0
    %454 = vmatprep.mubr.f32.mxu0 0.0
    %455 = vmatmul.mubr.f32.gmra.mrb[0].mxu0 %v388
    %v456 = vpop.f32.mrb[0].mxu0
    %v457 = vadd.f32 1e-05, %v456
    %v458 = vpop.f32.mrb[0].mxu0
    %459 = vdwg.mxu0
    %v460 = vrsqrt.pop %v457
    %v461 = vmul.f32 %v315, %v460
    %v462 = vld [vmem:[%s5] sm:$0x1]
    %v464 = vlaneseq
    %v465 = vshrl.u32 %v464, 7
    %v466 = vsub.s32 0, %v465
    %v467 = vrot.slane %v462, %v466
    %v469 = vmul.f32 %v461, %v467
    %v470 = vld [vmem:[%s6] sm:$0x1]
    %v472 = vlaneseq
    %v473 = vshrl.u32 %v472, 7
    %v474 = vsub.s32 0, %v473
    %v475 = vrot.slane %v470, %v474
    %v477 = vadd.f32 %v469, %v475
    %478 = vst [vmem:[%s9] sm:$0xff] %v477
    // Predicated region
    $region42: #{apply_jit.1} parent=1 // pred_check
      _
    $region43: #{apply_jit.1} parent=1 // pred_check_branch
      %480 = sbr.rel (0) target = $region45
    $region44: #{apply_jit.1} parent=1 // pred_region
      _
    $region45: #{apply_jit.1} parent=1 // pred_fallthru
      _
    // Predicated region
    $region46: #{apply_jit.1} parent=1 // pred_check
      _
    $region47: #{apply_jit.1} parent=1 // pred_check_branch
      %482 = sbr.rel (0) target = $region49
    $region48: #{apply_jit.1} parent=1 // pred_region
      _
    $region49: #{apply_jit.1} parent=1 // pred_fallthru
      _
    %483 = vsyncpa [#allocation3], 1

</llo_original>
